<compile_context>
chip_gen: v5e
topology: v5e:2x2
jax: 0.10.0
libtpu: 0.0.40
codegen_flags: <defaults>
</compile_context>

<pallas_src>
import functools

import jax
import jax.numpy as jnp
import numpy as np
from jax.experimental import pallas as pl
from jax.experimental.pallas import tpu as pltpu

FEAT = 256                    # per-modality feature width (fixed by the module)
U_HID = 128                   # u_head hidden width
NUM_MODALS = 2
M_IN = FEAT * NUM_MODALS      # 512
M_HID = U_HID * NUM_MODALS    # 256
L1_OUT = U_HID + M_HID        # 384  (u-head cols | m-head cols) per modality
L2_IN = 2 * U_HID + M_HID     # 512  (h_u_img | h_u_pt | h_m)
LANE = 128
MAX_TILE_B = 1024             # rows per grid step at large batch (VMEM-safe)


def _round_up(x, m):
    return (x + m - 1) // m * m


def _headnet_kernel(img_ref, pt_ref,
                    w1i_ref, b1i_ref, w1p_ref, b1p_ref,
                    w2_ref, b2_ref, out_ref, *, compute_dtype):
    """One batch tile: both fused 2-layer MLP heads, single packed output store."""

    def mm(a, b):
        # MXU matmul, f32 accumulation; operands optionally bf16.
        return jnp.dot(a.astype(compute_dtype), b.astype(compute_dtype),
                       preferred_element_type=jnp.float32)

    # ---- layer 1: per-modality fused weights (u_head cols | m_head cols).
    #      b1i carries [u_b1 | m_b1], b1p carries [u_b1 | 0], so the m-part
    #      pre-activation is simply z_img_m + z_pt_m (bias already included).
    z_img = mm(img_ref[...], w1i_ref[...]) + b1i_ref[...]            # (tb, 384)
    z_pt = mm(pt_ref[...], w1p_ref[...]) + b1p_ref[...]              # (tb, 384)

    h_u_img = jnp.maximum(z_img[:, :U_HID], 0.0)                     # (tb, 128)
    h_u_pt = jnp.maximum(z_pt[:, :U_HID], 0.0)                       # (tb, 128)
    h_m = jnp.maximum(z_img[:, U_HID:] + z_pt[:, U_HID:], 0.0)       # (tb, 256)

    # ---- layer 2: block-diagonal, lane-offset packed W2 places
    #      img_pred @ lanes [0:C), pt_pred @ [C:2C), joint_pred @ [2C:3C).
    #      Three dots against static row-slices == the fused block-diag GEMM,
    #      without materializing a (tb, 512) lane-concat temp.
    out = (mm(h_u_img, w2_ref[0:U_HID, :])
           + mm(h_u_pt, w2_ref[U_HID:2 * U_HID, :])
           + mm(h_m, w2_ref[2 * U_HID:, :])
           + b2_ref[...])                                            # (tb, c_pad)

    # Single lane-dense, unmasked store of the whole packed slab.
    out_ref[...] = out.astype(out_ref.dtype)


def _choose_tile_b(batch, itemsize):
    sub = {4: 8, 2: 16, 1: 32}.get(itemsize, 8)
    b_pad = _round_up(batch, sub)
    if b_pad <= sub:
        return b_pad
    # Target >= 2 grid steps (keeps both v7x TensorCores busy for mid-size B),
    # capped at MAX_TILE_B so per-step (~0.35us) overhead is amortized at large B.
    half = _round_up(-(-b_pad // 2), sub)
    return min(MAX_TILE_B, half)


def _pack_params(params, compute_dtype):
    """Pre-fuse weights in the wrapper (tiny, one-off XLA work)."""
    C = params["u_b2"].shape[-1]
    c_pad = _round_up(3 * C, LANE)
    f32 = jnp.float32

    def wdt(w):
        # Ship MXU weight operands in compute_dtype (halves weight DMA for bf16);
        # biases stay f32 so bias-add / ReLU stay f32 on the VPU.
        return w if compute_dtype == jnp.float32 else w.astype(compute_dtype)

    u_w1, u_b1 = params["u_w1"], params["u_b1"]
    u_w2, u_b2 = params["u_w2"], params["u_b2"]
    m_w1, m_b1 = params["m_w1"], params["m_b1"]
    m_w2, m_b2 = params["m_w2"], params["m_b2"]

    # Layer 1: per-modality fused weights -> cat([img, pt]) is never built.
    w1i = wdt(jnp.concatenate([u_w1, m_w1[:FEAT]], axis=1))          # (256, 384)
    w1p = wdt(jnp.concatenate([u_w1, m_w1[FEAT:]], axis=1))          # (256, 384)
    b1i = jnp.concatenate([u_b1, m_b1], axis=1).astype(f32)          # (1, 384)
    b1p = jnp.concatenate([u_b1, jnp.zeros_like(m_b1)], axis=1).astype(f32)

    # Layer 2: block-diagonal weight with lane offsets -> packed output slab.
    w2 = jnp.zeros((L2_IN, c_pad), f32)
    w2 = w2.at[0:U_HID, 0:C].set(u_w2)
    w2 = w2.at[U_HID:2 * U_HID, C:2 * C].set(u_w2)
    w2 = w2.at[2 * U_HID:, 2 * C:3 * C].set(m_w2)
    b2 = jnp.zeros((1, c_pad), f32)
    b2 = b2.at[:, 0:C].set(u_b2)
    b2 = b2.at[:, C:2 * C].set(u_b2)
    b2 = b2.at[:, 2 * C:3 * C].set(m_b2)
    return (w1i, b1i, w1p, b1p, wdt(w2), b2), c_pad


def headnet_dual_fused_packed(img_feat, pt_feat, params, *,
                              compute_dtype=jnp.float32,
                              out_dtype=jnp.float32):
    """Returns the packed (B, round_up(3*C, 128)) slab:
    lanes [0:C) = img_pred, [C:2C) = pt_pred, [2C:3C) = joint_pred, rest zeros."""
    B = img_feat.shape[0]
    (w1i, b1i, w1p, b1p, w2, b2), c_pad = _pack_params(params, compute_dtype)

    tile_b = _choose_tile_b(B, img_feat.dtype.itemsize)
    grid = (pl.cdiv(B, tile_b),)

    # VMEM at tile_b=1024 (f32 worst case): in blocks ~4 MB (double-buffered),
    # out blocks ~1 MB, weights ~2 MB, compiler temps ~6 MB  =>  ~13 MB, well
    # inside every chip's scoped-VMEM default; no vmem_limit override needed.
    row_spec = pl.BlockSpec((tile_b, FEAT), lambda i: (i, 0))

    def const_spec(arr):     # grid-invariant operand: stays VMEM-resident
        return pl.BlockSpec(arr.shape, lambda i: (0,) * arr.ndim)

    weights = (w1i, b1i, w1p, b1p, w2, b2)
    return pl.pallas_call(
        functools.partial(_headnet_kernel, compute_dtype=compute_dtype),
        grid=grid,
        in_specs=[row_spec, row_spec] + [const_spec(w) for w in weights],
        out_specs=pl.BlockSpec((tile_b, c_pad), lambda i: (i, 0)),
        out_shape=jax.ShapeDtypeStruct((B, c_pad), out_dtype),
        compiler_params=pltpu.CompilerParams(
            dimension_semantics=("parallel",)),
    )(img_feat, pt_feat, *weights)


def headnet_dual_fused(img_feat, pt_feat, params, *, compute_dtype=jnp.float32):
    """Mirrors HeadNet_dual_fused.forward -> (img_pred, pt_pred, joint_pred).

    Call this (or the *_packed variant) under jit so the output slices fuse
    with the consumer instead of re-streaming the slab through HBM.
    """
    C = params["u_b2"].shape[-1]
    slab = headnet_dual_fused_packed(img_feat, pt_feat, params,
                                     compute_dtype=compute_dtype)
    return slab[:, 0:C], slab[:, C:2 * C], slab[:, 2 * C:3 * C]


def init_params(key, num_classes):
    """Deterministic synthetic weights (same shapes as the PyTorch module)."""
    ks = jax.random.split(key, 8)

    def lin(kw, kb, fan_in, fan_out):
        bound = 1.0 / np.sqrt(fan_in)
        w = jax.random.uniform(kw, (fan_in, fan_out), jnp.float32, -bound, bound)
        b = jax.random.uniform(kb, (1, fan_out), jnp.float32, -bound, bound)
        return w, b

    u_w1, u_b1 = lin(ks[0], ks[1], FEAT, U_HID)
    u_w2, u_b2 = lin(ks[2], ks[3], U_HID, num_classes)
    m_w1, m_b1 = lin(ks[4], ks[5], M_IN, M_HID)
    m_w2, m_b2 = lin(ks[6], ks[7], M_HID, num_classes)
    return dict(u_w1=u_w1, u_b1=u_b1, u_w2=u_w2, u_b2=u_b2,
                m_w1=m_w1, m_b1=m_b1, m_w2=m_w2, m_b2=m_b2)


def reference(img_feat, pt_feat, p):
    """Plain-JAX reference at full f32 matmul precision."""
    hi = jax.lax.Precision.HIGHEST

    def mlp(x, w1, b1, w2, b2):
        h = jnp.maximum(jnp.dot(x, w1, precision=hi) + b1, 0.0)
        return jnp.dot(h, w2, precision=hi) + b2

    img_pred = mlp(img_feat, p["u_w1"], p["u_b1"], p["u_w2"], p["u_b2"])
    pt_pred = mlp(pt_feat, p["u_w1"], p["u_b1"], p["u_w2"], p["u_b2"])
    joint = mlp(jnp.concatenate([img_feat, pt_feat], axis=-1),
                p["m_w1"], p["m_b1"], p["m_w2"], p["m_b2"])
    return img_pred, pt_pred, joint


if __name__ == "__main__":
    NUM_CLASSES = 16
    key = jax.random.PRNGKey(0)
    k_img, k_pt, k_params = jax.random.split(key, 3)
    params = init_params(k_params, NUM_CLASSES)

    fwd_f32 = jax.jit(headnet_dual_fused)
    fwd_bf16 = jax.jit(functools.partial(headnet_dual_fused,
                                         compute_dtype=jnp.bfloat16))

    def check(outs, refs, tol):
        for o, r in zip(outs, refs):
            np.testing.assert_allclose(np.asarray(o, dtype=np.float32),
                                       np.asarray(r, dtype=np.float32),
                                       rtol=tol, atol=tol)

    # 1) small batch, single tile, f32 MXU operands.
    B = 8
    img = jax.random.normal(k_img, (B, FEAT), jnp.float32)
    pt = jax.random.normal(k_pt, (B, FEAT), jnp.float32)
    check(jax.block_until_ready(fwd_f32(img, pt, params)),
          reference(img, pt, params), 1e-3)

    # 2) ragged batch (not a multiple of the tile or of 8): multi-step grid
    #    with a masked last tile.
    B = 300
    img = jax.random.normal(k_img, (B, FEAT), jnp.float32)
    pt = jax.random.normal(k_pt, (B, FEAT), jnp.float32)
    check(jax.block_until_ready(fwd_f32(img, pt, params)),
          reference(img, pt, params), 1e-3)

    # 3) large batch hitting the full 1024-row tile with a 2-step parallel grid;
    #    bf16 inputs consumed directly (no wrapper cast) + bf16 MXU operands.
    B = 2048
    img = jax.random.normal(k_img, (B, FEAT), jnp.float32).astype(jnp.bfloat16)
    pt = jax.random.normal(k_pt, (B, FEAT), jnp.float32).astype(jnp.bfloat16)
    check(jax.block_until_ready(fwd_bf16(img, pt, params)),
          reference(img.astype(jnp.float32), pt.astype(jnp.float32), params),
          5e-2)

    print("KERNEL_OK")
</pallas_src>

<mosaic_0001>
module attributes {stable_mosaic.version = 11 : i64} {
  func.func @_headnet_kernel(%arg0: i32, %arg1: memref<8x256xf32, #tpu.memory_space<vmem>>, %arg2: memref<8x256xf32, #tpu.memory_space<vmem>>, %arg3: memref<256x384xf32, #tpu.memory_space<vmem>>, %arg4: memref<1x384xf32, #tpu.memory_space<vmem>>, %arg5: memref<256x384xf32, #tpu.memory_space<vmem>>, %arg6: memref<1x384xf32, #tpu.memory_space<vmem>>, %arg7: memref<512x128xf32, #tpu.memory_space<vmem>>, %arg8: memref<1x128xf32, #tpu.memory_space<vmem>>, %arg9: memref<8x128xf32, #tpu.memory_space<vmem>>) attributes {dimension_semantics = [#tpu.dimension_semantics<parallel>], iteration_bounds = array<i64: 1>, scalar_prefetch = 0 : i64, scratch_operands = 0 : i64, tpu.core_type = #tpu.core_type<tc>, window_params = [{transform_indices = @transform_0, window_bounds = array<i64: 8, 256>}, {transform_indices = @transform_1, window_bounds = array<i64: 8, 256>}, {pipeline_mode = #tpu.pipeline_mode<synchronous>, transform_indices = @transform_2, window_bounds = array<i64: 256, 384>}, {pipeline_mode = #tpu.pipeline_mode<synchronous>, transform_indices = @transform_3, window_bounds = array<i64: 1, 384>}, {pipeline_mode = #tpu.pipeline_mode<synchronous>, transform_indices = @transform_4, window_bounds = array<i64: 256, 384>}, {pipeline_mode = #tpu.pipeline_mode<synchronous>, transform_indices = @transform_5, window_bounds = array<i64: 1, 384>}, {pipeline_mode = #tpu.pipeline_mode<synchronous>, transform_indices = @transform_6, window_bounds = array<i64: 512, 128>}, {pipeline_mode = #tpu.pipeline_mode<synchronous>, transform_indices = @transform_7, window_bounds = array<i64: 1, 128>}, {transform_indices = @transform_8, window_bounds = array<i64: 8, 128>}]} {
    %c0 = arith.constant 0 : index
    %c0_0 = arith.constant 0 : index
    %0 = vector.load %arg1[%c0, %c0_0] : memref<8x256xf32, #tpu.memory_space<vmem>>, vector<8x256xf32>
    %c0_1 = arith.constant 0 : index
    %c0_2 = arith.constant 0 : index
    %1 = vector.load %arg3[%c0_1, %c0_2] : memref<256x384xf32, #tpu.memory_space<vmem>>, vector<256x384xf32>
    %cst = arith.constant dense<0.000000e+00> : vector<8x384xf32>
    %2 = tpu.matmul %0, %1, %cst {dimension_numbers = #tpu.dot_dimension_numbers<[1], [0], [0], [1], [0, 0, 1, 1], [], []>} : vector<8x256xf32>, vector<256x384xf32>, vector<8x384xf32> -> vector<8x384xf32>
    %c0_3 = arith.constant 0 : index
    %c0_4 = arith.constant 0 : index
    %3 = vector.load %arg4[%c0_3, %c0_4] : memref<1x384xf32, #tpu.memory_space<vmem>>, vector<1x384xf32>
    %4 = vector.broadcast %3 : vector<1x384xf32> to vector<8x384xf32>
    %5 = arith.addf %2, %4 : vector<8x384xf32>
    %c0_5 = arith.constant 0 : index
    %c0_6 = arith.constant 0 : index
    %6 = vector.load %arg2[%c0_5, %c0_6] : memref<8x256xf32, #tpu.memory_space<vmem>>, vector<8x256xf32>
    %c0_7 = arith.constant 0 : index
    %c0_8 = arith.constant 0 : index
    %7 = vector.load %arg5[%c0_7, %c0_8] : memref<256x384xf32, #tpu.memory_space<vmem>>, vector<256x384xf32>
    %cst_9 = arith.constant dense<0.000000e+00> : vector<8x384xf32>
    %8 = tpu.matmul %6, %7, %cst_9 {dimension_numbers = #tpu.dot_dimension_numbers<[1], [0], [0], [1], [0, 0, 1, 1], [], []>} : vector<8x256xf32>, vector<256x384xf32>, vector<8x384xf32> -> vector<8x384xf32>
    %c0_10 = arith.constant 0 : index
    %c0_11 = arith.constant 0 : index
    %9 = vector.load %arg6[%c0_10, %c0_11] : memref<1x384xf32, #tpu.memory_space<vmem>>, vector<1x384xf32>
    %10 = vector.broadcast %9 : vector<1x384xf32> to vector<8x384xf32>
    %11 = arith.addf %8, %10 : vector<8x384xf32>
    %12 = vector.extract_strided_slice %5 {offsets = [0, 0], sizes = [8, 128], strides = [1, 1]} : vector<8x384xf32> to vector<8x128xf32>
    %cst_12 = arith.constant 0.000000e+00 : f32
    %13 = vector.broadcast %cst_12 : f32 to vector<8x128xf32>
    %14 = arith.maximumf %12, %13 : vector<8x128xf32>
    %15 = vector.extract_strided_slice %11 {offsets = [0, 0], sizes = [8, 128], strides = [1, 1]} : vector<8x384xf32> to vector<8x128xf32>
    %cst_13 = arith.constant 0.000000e+00 : f32
    %16 = vector.broadcast %cst_13 : f32 to vector<8x128xf32>
    %17 = arith.maximumf %15, %16 : vector<8x128xf32>
    %18 = vector.extract_strided_slice %5 {offsets = [0, 128], sizes = [8, 256], strides = [1, 1]} : vector<8x384xf32> to vector<8x256xf32>
    %19 = vector.extract_strided_slice %11 {offsets = [0, 128], sizes = [8, 256], strides = [1, 1]} : vector<8x384xf32> to vector<8x256xf32>
    %20 = arith.addf %18, %19 : vector<8x256xf32>
    %cst_14 = arith.constant 0.000000e+00 : f32
    %21 = vector.broadcast %cst_14 : f32 to vector<8x256xf32>
    %22 = arith.maximumf %20, %21 : vector<8x256xf32>
    %c0_15 = arith.constant 0 : index
    %c0_16 = arith.constant 0 : index
    %23 = vector.load %arg7[%c0_15, %c0_16] : memref<512x128xf32, #tpu.memory_space<vmem>>, vector<128x128xf32>
    %cst_17 = arith.constant dense<0.000000e+00> : vector<8x128xf32>
    %24 = tpu.matmul %14, %23, %cst_17 {dimension_numbers = #tpu.dot_dimension_numbers<[1], [0], [0], [1], [0, 0, 1, 1], [], []>} : vector<8x128xf32>, vector<128x128xf32>, vector<8x128xf32> -> vector<8x128xf32>
    %c128 = arith.constant 128 : index
    %c0_18 = arith.constant 0 : index
    %25 = vector.load %arg7[%c128, %c0_18] : memref<512x128xf32, #tpu.memory_space<vmem>>, vector<128x128xf32>
    %cst_19 = arith.constant dense<0.000000e+00> : vector<8x128xf32>
    %26 = tpu.matmul %17, %25, %cst_19 {dimension_numbers = #tpu.dot_dimension_numbers<[1], [0], [0], [1], [0, 0, 1, 1], [], []>} : vector<8x128xf32>, vector<128x128xf32>, vector<8x128xf32> -> vector<8x128xf32>
    %27 = arith.addf %24, %26 : vector<8x128xf32>
    %c256 = arith.constant 256 : index
    %c0_20 = arith.constant 0 : index
    %28 = vector.load %arg7[%c256, %c0_20] : memref<512x128xf32, #tpu.memory_space<vmem>>, vector<256x128xf32>
    %cst_21 = arith.constant dense<0.000000e+00> : vector<8x128xf32>
    %29 = tpu.matmul %22, %28, %cst_21 {dimension_numbers = #tpu.dot_dimension_numbers<[1], [0], [0], [1], [0, 0, 1, 1], [], []>} : vector<8x256xf32>, vector<256x128xf32>, vector<8x128xf32> -> vector<8x128xf32>
    %30 = arith.addf %27, %29 : vector<8x128xf32>
    %c0_22 = arith.constant 0 : index
    %c0_23 = arith.constant 0 : index
    %31 = vector.load %arg8[%c0_22, %c0_23] : memref<1x128xf32, #tpu.memory_space<vmem>>, vector<1x128xf32>
    %32 = vector.broadcast %31 : vector<1x128xf32> to vector<8x128xf32>
    %33 = arith.addf %30, %32 : vector<8x128xf32>
    %c0_24 = arith.constant 0 : index
    %c0_25 = arith.constant 0 : index
    %34 = vector.load %arg9[%c0_24, %c0_25] : memref<8x128xf32, #tpu.memory_space<vmem>>, vector<8x128xf32>
    tpu.vector_store %arg9[%c0_24, %c0_25], %33 {strides = array<i32>} : memref<8x128xf32, #tpu.memory_space<vmem>>, vector<8x128xf32>,
    return
  }
  func.func @transform_0(%arg0: i32) -> (i32, i32) {
    %c0_i32 = arith.constant 0 : i32
    %c0_i32_0 = arith.constant 0 : i32
    return %arg0, %c0_i32 : i32, i32
  }
  func.func @transform_1(%arg0: i32) -> (i32, i32) {
    %c0_i32 = arith.constant 0 : i32
    %c0_i32_0 = arith.constant 0 : i32
    return %arg0, %c0_i32 : i32, i32
  }
  func.func @transform_2(%arg0: i32) -> (i32, i32) {
    %c0_i32 = arith.constant 0 : i32
    %c0_i32_0 = arith.constant 0 : i32
    %c0_i32_1 = arith.constant 0 : i32
    return %c0_i32, %c0_i32_0 : i32, i32
  }
  func.func @transform_3(%arg0: i32) -> (i32, i32) {
    %c0_i32 = arith.constant 0 : i32
    %c0_i32_0 = arith.constant 0 : i32
    %c0_i32_1 = arith.constant 0 : i32
    return %c0_i32, %c0_i32_0 : i32, i32
  }
  func.func @transform_4(%arg0: i32) -> (i32, i32) {
    %c0_i32 = arith.constant 0 : i32
    %c0_i32_0 = arith.constant 0 : i32
    %c0_i32_1 = arith.constant 0 : i32
    return %c0_i32, %c0_i32_0 : i32, i32
  }
  func.func @transform_5(%arg0: i32) -> (i32, i32) {
    %c0_i32 = arith.constant 0 : i32
    %c0_i32_0 = arith.constant 0 : i32
    %c0_i32_1 = arith.constant 0 : i32
    return %c0_i32, %c0_i32_0 : i32, i32
  }
  func.func @transform_6(%arg0: i32) -> (i32, i32) {
    %c0_i32 = arith.constant 0 : i32
    %c0_i32_0 = arith.constant 0 : i32
    %c0_i32_1 = arith.constant 0 : i32
    return %c0_i32, %c0_i32_0 : i32, i32
  }
  func.func @transform_7(%arg0: i32) -> (i32, i32) {
    %c0_i32 = arith.constant 0 : i32
    %c0_i32_0 = arith.constant 0 : i32
    %c0_i32_1 = arith.constant 0 : i32
    return %c0_i32, %c0_i32_0 : i32, i32
  }
  func.func @transform_8(%arg0: i32) -> (i32, i32) {
    %c0_i32 = arith.constant 0 : i32
    %c0_i32_0 = arith.constant 0 : i32
    return %arg0, %c0_i32 : i32, i32
  }
}

</mosaic_0001>

<llo_original>
// kernel: headnet_dual_fused.1
$region0: #{headnet_dual_fused.1}
  #allocation0 [shape = 'u32[]', space=smem, size = 0x4, offset = 0x4, fixed_abs, tag = 'smem constant byte address 0x4 - core index']
  #allocation1 [shape = 'u32[72,128]{1,0:T(1,128)}', space=vmem, size = 0x9000, scoped, tag = 'internal scratch']
  %s0 = inlined_call_operand.vmem [shape: f32[8,256], index: 0, kind: input, shape index: {}]
  %s1 = inlined_call_operand.vmem [shape: f32[8,256], index: 1, kind: input, shape index: {}]
  %s2 = inlined_call_operand.vmem [shape: f32[256,384], index: 2, kind: input, shape index: {}]
  %s3 = inlined_call_operand.vmem [shape: f32[1,384], index: 3, kind: input, shape index: {}]
  %s4 = inlined_call_operand.vmem [shape: f32[256,384], index: 4, kind: input, shape index: {}]
  %s5 = inlined_call_operand.vmem [shape: f32[1,384], index: 5, kind: input, shape index: {}]
  %s6 = inlined_call_operand.vmem [shape: f32[512,128], index: 6, kind: input, shape index: {}]
  %s7 = inlined_call_operand.vmem [shape: f32[1,128], index: 7, kind: input, shape index: {}]
  %s8 = inlined_call_operand.vmem [shape: f32[8,128], index: 8, kind: output, shape index: {}]
  %s9 = sld [smem:[#allocation0]]
  $region42: #{headnet_dual_fused.1} parent=0
    _
  %s11 = ssub.s32 1, %s9
  %s12 = scalar_select 0, %s11, %s9
  // Predicated region
  $region2: #{headnet_dual_fused.1} parent=0 // pred_check
    _
  $region3: #{headnet_dual_fused.1} parent=0 // pred_check_branch
    %14 = sbr.rel (0) target = $region5
  $region4: #{headnet_dual_fused.1} parent=0 // pred_region
    _
  $region5: #{headnet_dual_fused.1} parent=0 // pred_fallthru
    _
  // Predicated region
  $region6: #{headnet_dual_fused.1} parent=0 // pred_check
    _
  $region7: #{headnet_dual_fused.1} parent=0 // pred_check_branch
    %16 = sbr.rel (0) target = $region9
  $region8: #{headnet_dual_fused.1} parent=0 // pred_region
    _
  $region9: #{headnet_dual_fused.1} parent=0 // pred_fallthru
    _
  // Predicated region
  $region10: #{headnet_dual_fused.1} parent=0 // pred_check
    _
  $region11: #{headnet_dual_fused.1} parent=0 // pred_check_branch
    %18 = sbr.rel (0) target = $region13
  $region12: #{headnet_dual_fused.1} parent=0 // pred_region
    _
  $region13: #{headnet_dual_fused.1} parent=0 // pred_fallthru
    _
  // Predicated region
  $region14: #{headnet_dual_fused.1} parent=0 // pred_check
    _
  $region15: #{headnet_dual_fused.1} parent=0 // pred_check_branch
    %20 = sbr.rel (0) target = $region17
  $region16: #{headnet_dual_fused.1} parent=0 // pred_region
    _
  $region17: #{headnet_dual_fused.1} parent=0 // pred_fallthru
    _
  // Predicated region
  $region18: #{headnet_dual_fused.1} parent=0 // pred_check
    _
  $region19: #{headnet_dual_fused.1} parent=0 // pred_check_branch
    %22 = sbr.rel (0) target = $region21
  $region20: #{headnet_dual_fused.1} parent=0 // pred_region
    _
  $region21: #{headnet_dual_fused.1} parent=0 // pred_fallthru
    _
  // Predicated region
  $region22: #{headnet_dual_fused.1} parent=0 // pred_check
    _
  $region23: #{headnet_dual_fused.1} parent=0 // pred_check_branch
    %24 = sbr.rel (0) target = $region25
  $region24: #{headnet_dual_fused.1} parent=0 // pred_region
    _
  $region25: #{headnet_dual_fused.1} parent=0 // pred_fallthru
    _
  // Predicated region
  $region26: #{headnet_dual_fused.1} parent=0 // pred_check
    _
  $region27: #{headnet_dual_fused.1} parent=0 // pred_check_branch
    %26 = sbr.rel (0) target = $region29
  $region28: #{headnet_dual_fused.1} parent=0 // pred_region
    _
  $region29: #{headnet_dual_fused.1} parent=0 // pred_fallthru
    _
  // Predicated region
  $region30: #{headnet_dual_fused.1} parent=0 // pred_check
    _
  $region31: #{headnet_dual_fused.1} parent=0 // pred_check_branch
    %28 = sbr.rel (0) target = $region33
  $region32: #{headnet_dual_fused.1} parent=0 // pred_region
    _
  $region33: #{headnet_dual_fused.1} parent=0 // pred_fallthru
    _
  %v29 = vld [vmem:[%s0] sm:$0xff]
  %v30 = vld [vmem:[%s0 + $0x8] sm:$0xff]
  %v31 = vld [vmem:[%s2] sm:$0xff]
  %v32 = vld [vmem:[%s2 + $0x8] sm:$0xff]
  %v33 = vld [vmem:[%s2 + $0x10] sm:$0xff]
  %v34 = vld [vmem:[%s2 + $0x18] sm:$0xff]
  %v35 = vld [vmem:[%s2 + $0x20] sm:$0xff]
  %v36 = vld [vmem:[%s2 + $0x28] sm:$0xff]
  %v37 = vld [vmem:[%s2 + $0x30] sm:$0xff]
  %v38 = vld [vmem:[%s2 + $0x38] sm:$0xff]
  %v39 = vld [vmem:[%s2 + $0x40] sm:$0xff]
  %v40 = vld [vmem:[%s2 + $0x48] sm:$0xff]
  %v41 = vld [vmem:[%s2 + $0x50] sm:$0xff]
  %v42 = vld [vmem:[%s2 + $0x58] sm:$0xff]
  %v43 = vld [vmem:[%s2 + $0x60] sm:$0xff]
  %v44 = vld [vmem:[%s2 + $0x68] sm:$0xff]
  %v45 = vld [vmem:[%s2 + $0x70] sm:$0xff]
  %v46 = vld [vmem:[%s2 + $0x78] sm:$0xff]
  %v47 = vld [vmem:[%s2 + $0x80] sm:$0xff]
  %v48 = vld [vmem:[%s2 + $0x88] sm:$0xff]
  %v49 = vld [vmem:[%s2 + $0x90] sm:$0xff]
  %v50 = vld [vmem:[%s2 + $0x98] sm:$0xff]
  %v51 = vld [vmem:[%s2 + $0xa0] sm:$0xff]
  %v52 = vld [vmem:[%s2 + $0xa8] sm:$0xff]
  %v53 = vld [vmem:[%s2 + $0xb0] sm:$0xff]
  %v54 = vld [vmem:[%s2 + $0xb8] sm:$0xff]
  %v55 = vld [vmem:[%s2 + $0xc0] sm:$0xff]
  %v56 = vld [vmem:[%s2 + $0xc8] sm:$0xff]
  %v57 = vld [vmem:[%s2 + $0xd0] sm:$0xff]
  %v58 = vld [vmem:[%s2 + $0xd8] sm:$0xff]
  %v59 = vld [vmem:[%s2 + $0xe0] sm:$0xff]
  %v60 = vld [vmem:[%s2 + $0xe8] sm:$0xff]
  %v61 = vld [vmem:[%s2 + $0xf0] sm:$0xff]
  %v62 = vld [vmem:[%s2 + $0xf8] sm:$0xff]
  %v63 = vld [vmem:[%s2 + $0x100] sm:$0xff]
  %v64 = vld [vmem:[%s2 + $0x108] sm:$0xff]
  %v65 = vld [vmem:[%s2 + $0x110] sm:$0xff]
  %v66 = vld [vmem:[%s2 + $0x118] sm:$0xff]
  %v67 = vld [vmem:[%s2 + $0x120] sm:$0xff]
  %v68 = vld [vmem:[%s2 + $0x128] sm:$0xff]
  %v69 = vld [vmem:[%s2 + $0x130] sm:$0xff]
  %v70 = vld [vmem:[%s2 + $0x138] sm:$0xff]
  %v71 = vld [vmem:[%s2 + $0x140] sm:$0xff]
  %v72 = vld [vmem:[%s2 + $0x148] sm:$0xff]
  %v73 = vld [vmem:[%s2 + $0x150] sm:$0xff]
  %v74 = vld [vmem:[%s2 + $0x158] sm:$0xff]
  %v75 = vld [vmem:[%s2 + $0x160] sm:$0xff]
  %v76 = vld [vmem:[%s2 + $0x168] sm:$0xff]
  %v77 = vld [vmem:[%s2 + $0x170] sm:$0xff]
  %v78 = vld [vmem:[%s2 + $0x178] sm:$0xff]
  %v79 = vld [vmem:[%s2 + $0x180] sm:$0xff]
  %v80 = vld [vmem:[%s2 + $0x188] sm:$0xff]
  %v81 = vld [vmem:[%s2 + $0x190] sm:$0xff]
  %v82 = vld [vmem:[%s2 + $0x198] sm:$0xff]
  %v83 = vld [vmem:[%s2 + $0x1a0] sm:$0xff]
  %v84 = vld [vmem:[%s2 + $0x1a8] sm:$0xff]
  %v85 = vld [vmem:[%s2 + $0x1b0] sm:$0xff]
  %v86 = vld [vmem:[%s2 + $0x1b8] sm:$0xff]
  %v87 = vld [vmem:[%s2 + $0x1c0] sm:$0xff]
  %v88 = vld [vmem:[%s2 + $0x1c8] sm:$0xff]
  %v89 = vld [vmem:[%s2 + $0x1d0] sm:$0xff]
  %v90 = vld [vmem:[%s2 + $0x1d8] sm:$0xff]
  %v91 = vld [vmem:[%s2 + $0x1e0] sm:$0xff]
  %v92 = vld [vmem:[%s2 + $0x1e8] sm:$0xff]
  %v93 = vld [vmem:[%s2 + $0x1f0] sm:$0xff]
  %v94 = vld [vmem:[%s2 + $0x1f8] sm:$0xff]
  %v95 = vld [vmem:[%s2 + $0x200] sm:$0xff]
  %v96 = vld [vmem:[%s2 + $0x208] sm:$0xff]
  %v97 = vld [vmem:[%s2 + $0x210] sm:$0xff]
  %v98 = vld [vmem:[%s2 + $0x218] sm:$0xff]
  %v99 = vld [vmem:[%s2 + $0x220] sm:$0xff]
  %v100 = vld [vmem:[%s2 + $0x228] sm:$0xff]
  %v101 = vld [vmem:[%s2 + $0x230] sm:$0xff]
  %v102 = vld [vmem:[%s2 + $0x238] sm:$0xff]
  %v103 = vld [vmem:[%s2 + $0x240] sm:$0xff]
  %v104 = vld [vmem:[%s2 + $0x248] sm:$0xff]
  %v105 = vld [vmem:[%s2 + $0x250] sm:$0xff]
  %v106 = vld [vmem:[%s2 + $0x258] sm:$0xff]
  %v107 = vld [vmem:[%s2 + $0x260] sm:$0xff]
  %v108 = vld [vmem:[%s2 + $0x268] sm:$0xff]
  %v109 = vld [vmem:[%s2 + $0x270] sm:$0xff]
  %v110 = vld [vmem:[%s2 + $0x278] sm:$0xff]
  %v111 = vld [vmem:[%s2 + $0x280] sm:$0xff]
  %v112 = vld [vmem:[%s2 + $0x288] sm:$0xff]
  %v113 = vld [vmem:[%s2 + $0x290] sm:$0xff]
  %v114 = vld [vmem:[%s2 + $0x298] sm:$0xff]
  %v115 = vld [vmem:[%s2 + $0x2a0] sm:$0xff]
  %v116 = vld [vmem:[%s2 + $0x2a8] sm:$0xff]
  %v117 = vld [vmem:[%s2 + $0x2b0] sm:$0xff]
  %v118 = vld [vmem:[%s2 + $0x2b8] sm:$0xff]
  %v119 = vld [vmem:[%s2 + $0x2c0] sm:$0xff]
  %v120 = vld [vmem:[%s2 + $0x2c8] sm:$0xff]
  %v121 = vld [vmem:[%s2 + $0x2d0] sm:$0xff]
  %v122 = vld [vmem:[%s2 + $0x2d8] sm:$0xff]
  %v123 = vld [vmem:[%s2 + $0x2e0] sm:$0xff]
  %v124 = vld [vmem:[%s2 + $0x2e8] sm:$0xff]
  %v125 = vld [vmem:[%s2 + $0x2f0] sm:$0xff]
  %v126 = vld [vmem:[%s2 + $0x2f8] sm:$0xff]
  %v127 = vld [vmem:[%s3] sm:$0x7]
  %v129 = vperm.slane %v127, 0
  %v130 = vperm.slane %v127, 1
  %v131 = vperm.slane %v127, 2
  %135 = vmatpush.msra.mxu0 %v76
  %136 = vmatpush.msra.mxu0 %v73
  %137 = vmatpush.msra.mxu0 %v70
  %138 = vmatpush.msra.mxu0 %v67
  %139 = vmatpush.msra.mxu0 %v64
  %140 = vmatpush.msra.mxu0 %v61
  %141 = vmatpush.msra.mxu0 %v58
  %142 = vmatpush.msra.mxu0 %v55
  %143 = vmatpush.msra.mxu0 %v52
  %144 = vmatpush.msra.mxu0 %v49
  %145 = vmatpush.msra.mxu0 %v46
  %146 = vmatpush.msra.mxu0 %v43
  %147 = vmatpush.msra.mxu0 %v40
  %148 = vmatpush.msra.mxu0 %v37
  %149 = vmatpush.msra.mxu0 %v34
  %150 = vmatpush.msra.mxu0 %v31
  %151 = vmatmul.f32.gmra.mxu0 %v29
  %v152 = vpop.f32.mrf.mxu0
  %v153 = vadd.f32 %v129, %v152
  %154 = vdwg.mxu0
  %155 = vmatpush.msra.mxu0 %v124
  %156 = vmatpush.msra.mxu0 %v121
  %157 = vmatpush.msra.mxu0 %v118
  %158 = vmatpush.msra.mxu0 %v115
  %159 = vmatpush.msra.mxu0 %v112
  %160 = vmatpush.msra.mxu0 %v109
  %161 = vmatpush.msra.mxu0 %v106
  %162 = vmatpush.msra.mxu0 %v103
  %163 = vmatpush.msra.mxu0 %v100
  %164 = vmatpush.msra.mxu0 %v97
  %165 = vmatpush.msra.mxu0 %v94
  %166 = vmatpush.msra.mxu0 %v91
  %167 = vmatpush.msra.mxu0 %v88
  %168 = vmatpush.msra.mxu0 %v85
  %169 = vmatpush.msra.mxu0 %v82
  %170 = vmatpush.msra.mxu0 %v79
  %171 = vmatmul.f32.gmra.mxu0 %v30
  %v172 = vpop.f32.mrf.mxu0
  %v173 = vadd.f32 %v153, %v172
  %174 = vdwg.mxu0
  %175 = vmatpush.msra.mxu0 %v77
  %176 = vmatpush.msra.mxu0 %v74
  %177 = vmatpush.msra.mxu0 %v71
  %178 = vmatpush.msra.mxu0 %v68
  %179 = vmatpush.msra.mxu0 %v65
  %180 = vmatpush.msra.mxu0 %v62
  %181 = vmatpush.msra.mxu0 %v59
  %182 = vmatpush.msra.mxu0 %v56
  %183 = vmatpush.msra.mxu0 %v53
  %184 = vmatpush.msra.mxu0 %v50
  %185 = vmatpush.msra.mxu0 %v47
  %186 = vmatpush.msra.mxu0 %v44
  %187 = vmatpush.msra.mxu0 %v41
  %188 = vmatpush.msra.mxu0 %v38
  %189 = vmatpush.msra.mxu0 %v35
  %190 = vmatpush.msra.mxu0 %v32
  %191 = vmatmul.f32.gmra.mxu0 %v29
  %v192 = vpop.f32.mrf.mxu0
  %v193 = vadd.f32 %v130, %v192
  %194 = vdwg.mxu0
  %195 = vmatpush.msra.mxu0 %v125
  %196 = vmatpush.msra.mxu0 %v122
  %197 = vmatpush.msra.mxu0 %v119
  %198 = vmatpush.msra.mxu0 %v116
  %199 = vmatpush.msra.mxu0 %v113
  %200 = vmatpush.msra.mxu0 %v110
  %201 = vmatpush.msra.mxu0 %v107
  %202 = vmatpush.msra.mxu0 %v104
  %203 = vmatpush.msra.mxu0 %v101
  %204 = vmatpush.msra.mxu0 %v98
  %205 = vmatpush.msra.mxu0 %v95
  %206 = vmatpush.msra.mxu0 %v92
  %207 = vmatpush.msra.mxu0 %v89
  %208 = vmatpush.msra.mxu0 %v86
  %209 = vmatpush.msra.mxu0 %v83
  %210 = vmatpush.msra.mxu0 %v80
  %211 = vmatmul.f32.gmra.mxu0 %v30
  %v212 = vpop.f32.mrf.mxu0
  %v213 = vadd.f32 %v193, %v212
  %214 = vdwg.mxu0
  %215 = vmatpush.msra.mxu0 %v78
  %216 = vmatpush.msra.mxu0 %v75
  %217 = vmatpush.msra.mxu0 %v72
  %218 = vmatpush.msra.mxu0 %v69
  %219 = vmatpush.msra.mxu0 %v66
  %220 = vmatpush.msra.mxu0 %v63
  %221 = vmatpush.msra.mxu0 %v60
  %222 = vmatpush.msra.mxu0 %v57
  %223 = vmatpush.msra.mxu0 %v54
  %224 = vmatpush.msra.mxu0 %v51
  %225 = vmatpush.msra.mxu0 %v48
  %226 = vmatpush.msra.mxu0 %v45
  %227 = vmatpush.msra.mxu0 %v42
  %228 = vmatpush.msra.mxu0 %v39
  %229 = vmatpush.msra.mxu0 %v36
  %230 = vmatpush.msra.mxu0 %v33
  %231 = vmatmul.f32.gmra.mxu0 %v29
  %v232 = vpop.f32.mrf.mxu0
  %v233 = vadd.f32 %v131, %v232
  %234 = vdwg.mxu0
  %235 = vmatpush.msra.mxu0 %v126
  %236 = vmatpush.msra.mxu0 %v123
  %237 = vmatpush.msra.mxu0 %v120
  %238 = vmatpush.msra.mxu0 %v117
  %239 = vmatpush.msra.mxu0 %v114
  %240 = vmatpush.msra.mxu0 %v111
  %241 = vmatpush.msra.mxu0 %v108
  %242 = vmatpush.msra.mxu0 %v105
  %243 = vmatpush.msra.mxu0 %v102
  %244 = vmatpush.msra.mxu0 %v99
  %245 = vmatpush.msra.mxu0 %v96
  %246 = vmatpush.msra.mxu0 %v93
  %247 = vmatpush.msra.mxu0 %v90
  %248 = vmatpush.msra.mxu0 %v87
  %249 = vmatpush.msra.mxu0 %v84
  %250 = vmatpush.msra.mxu0 %v81
  %251 = vmatmul.f32.gmra.mxu0 %v30
  %v252 = vpop.f32.mrf.mxu0
  %v253 = vadd.f32 %v233, %v252
  %254 = vdwg.mxu0
  %v255 = vld [vmem:[%s1] sm:$0xff]
  %v256 = vld [vmem:[%s1 + $0x8] sm:$0xff]
  %v257 = vld [vmem:[%s4] sm:$0xff]
  %v258 = vld [vmem:[%s4 + $0x8] sm:$0xff]
  %v259 = vld [vmem:[%s4 + $0x10] sm:$0xff]
  %v260 = vld [vmem:[%s4 + $0x18] sm:$0xff]
  %v261 = vld [vmem:[%s4 + $0x20] sm:$0xff]
  %v262 = vld [vmem:[%s4 + $0x28] sm:$0xff]
  %v263 = vld [vmem:[%s4 + $0x30] sm:$0xff]
  %v264 = vld [vmem:[%s4 + $0x38] sm:$0xff]
  %v265 = vld [vmem:[%s4 + $0x40] sm:$0xff]
  %v266 = vld [vmem:[%s4 + $0x48] sm:$0xff]
  %v267 = vld [vmem:[%s4 + $0x50] sm:$0xff]
  %v268 = vld [vmem:[%s4 + $0x58] sm:$0xff]
  %v269 = vld [vmem:[%s4 + $0x60] sm:$0xff]
  %v270 = vld [vmem:[%s4 + $0x68] sm:$0xff]
  %v271 = vld [vmem:[%s4 + $0x70] sm:$0xff]
  %v272 = vld [vmem:[%s4 + $0x78] sm:$0xff]
  %v273 = vld [vmem:[%s4 + $0x80] sm:$0xff]
  %v274 = vld [vmem:[%s4 + $0x88] sm:$0xff]
  %v275 = vld [vmem:[%s4 + $0x90] sm:$0xff]
  %v276 = vld [vmem:[%s4 + $0x98] sm:$0xff]
  %v277 = vld [vmem:[%s4 + $0xa0] sm:$0xff]
  %v278 = vld [vmem:[%s4 + $0xa8] sm:$0xff]
  %v279 = vld [vmem:[%s4 + $0xb0] sm:$0xff]
  %v280 = vld [vmem:[%s4 + $0xb8] sm:$0xff]
  %v281 = vld [vmem:[%s4 + $0xc0] sm:$0xff]
  %v282 = vld [vmem:[%s4 + $0xc8] sm:$0xff]
  %v283 = vld [vmem:[%s4 + $0xd0] sm:$0xff]
  %v284 = vld [vmem:[%s4 + $0xd8] sm:$0xff]
  %v285 = vld [vmem:[%s4 + $0xe0] sm:$0xff]
  %v286 = vld [vmem:[%s4 + $0xe8] sm:$0xff]
  %v287 = vld [vmem:[%s4 + $0xf0] sm:$0xff]
  %v288 = vld [vmem:[%s4 + $0xf8] sm:$0xff]
  %v289 = vld [vmem:[%s4 + $0x100] sm:$0xff]
  %v290 = vld [vmem:[%s4 + $0x108] sm:$0xff]
  %v291 = vld [vmem:[%s4 + $0x110] sm:$0xff]
  %v292 = vld [vmem:[%s4 + $0x118] sm:$0xff]
  %v293 = vld [vmem:[%s4 + $0x120] sm:$0xff]
  %v294 = vld [vmem:[%s4 + $0x128] sm:$0xff]
  %v295 = vld [vmem:[%s4 + $0x130] sm:$0xff]
  %v296 = vld [vmem:[%s4 + $0x138] sm:$0xff]
  %v297 = vld [vmem:[%s4 + $0x140] sm:$0xff]
  %v298 = vld [vmem:[%s4 + $0x148] sm:$0xff]
  %v299 = vld [vmem:[%s4 + $0x150] sm:$0xff]
  %v300 = vld [vmem:[%s4 + $0x158] sm:$0xff]
  %v301 = vld [vmem:[%s4 + $0x160] sm:$0xff]
  %v302 = vld [vmem:[%s4 + $0x168] sm:$0xff]
  %v303 = vld [vmem:[%s4 + $0x170] sm:$0xff]
  %v304 = vld [vmem:[%s4 + $0x178] sm:$0xff]
  %v305 = vld [vmem:[%s4 + $0x180] sm:$0xff]
  %v306 = vld [vmem:[%s4 + $0x188] sm:$0xff]
  %v307 = vld [vmem:[%s4 + $0x190] sm:$0xff]
  %v308 = vld [vmem:[%s4 + $0x198] sm:$0xff]
  %v309 = vld [vmem:[%s4 + $0x1a0] sm:$0xff]
  %v310 = vld [vmem:[%s4 + $0x1a8] sm:$0xff]
  %v311 = vld [vmem:[%s4 + $0x1b0] sm:$0xff]
  %v312 = vld [vmem:[%s4 + $0x1b8] sm:$0xff]
  %v313 = vld [vmem:[%s4 + $0x1c0] sm:$0xff]
  %v314 = vld [vmem:[%s4 + $0x1c8] sm:$0xff]
  %v315 = vld [vmem:[%s4 + $0x1d0] sm:$0xff]
  %v316 = vld [vmem:[%s4 + $0x1d8] sm:$0xff]
  %v317 = vld [vmem:[%s4 + $0x1e0] sm:$0xff]
  %v318 = vld [vmem:[%s4 + $0x1e8] sm:$0xff]
  %v319 = vld [vmem:[%s4 + $0x1f0] sm:$0xff]
  %v320 = vld [vmem:[%s4 + $0x1f8] sm:$0xff]
  %v321 = vld [vmem:[%s4 + $0x200] sm:$0xff]
  %v322 = vld [vmem:[%s4 + $0x208] sm:$0xff]
  %v323 = vld [vmem:[%s4 + $0x210] sm:$0xff]
  %v324 = vld [vmem:[%s4 + $0x218] sm:$0xff]
  %v325 = vld [vmem:[%s4 + $0x220] sm:$0xff]
  %v326 = vld [vmem:[%s4 + $0x228] sm:$0xff]
  %v327 = vld [vmem:[%s4 + $0x230] sm:$0xff]
  %v328 = vld [vmem:[%s4 + $0x238] sm:$0xff]
  %v329 = vld [vmem:[%s4 + $0x240] sm:$0xff]
  %v330 = vld [vmem:[%s4 + $0x248] sm:$0xff]
  %v331 = vld [vmem:[%s4 + $0x250] sm:$0xff]
  %v332 = vld [vmem:[%s4 + $0x258] sm:$0xff]
  %v333 = vld [vmem:[%s4 + $0x260] sm:$0xff]
  %v334 = vld [vmem:[%s4 + $0x268] sm:$0xff]
  %v335 = vld [vmem:[%s4 + $0x270] sm:$0xff]
  %v336 = vld [vmem:[%s4 + $0x278] sm:$0xff]
  %v337 = vld [vmem:[%s4 + $0x280] sm:$0xff]
  %v338 = vld [vmem:[%s4 + $0x288] sm:$0xff]
  %v339 = vld [vmem:[%s4 + $0x290] sm:$0xff]
  %v340 = vld [vmem:[%s4 + $0x298] sm:$0xff]
  %v341 = vld [vmem:[%s4 + $0x2a0] sm:$0xff]
  %v342 = vld [vmem:[%s4 + $0x2a8] sm:$0xff]
  %v343 = vld [vmem:[%s4 + $0x2b0] sm:$0xff]
  %v344 = vld [vmem:[%s4 + $0x2b8] sm:$0xff]
  %v345 = vld [vmem:[%s4 + $0x2c0] sm:$0xff]
  %v346 = vld [vmem:[%s4 + $0x2c8] sm:$0xff]
  %v347 = vld [vmem:[%s4 + $0x2d0] sm:$0xff]
  %v348 = vld [vmem:[%s4 + $0x2d8] sm:$0xff]
  %v349 = vld [vmem:[%s4 + $0x2e0] sm:$0xff]
  %v350 = vld [vmem:[%s4 + $0x2e8] sm:$0xff]
  %v351 = vld [vmem:[%s4 + $0x2f0] sm:$0xff]
  %v352 = vld [vmem:[%s4 + $0x2f8] sm:$0xff]
  %v353 = vld [vmem:[%s5] sm:$0x7]
  %v355 = vperm.slane %v353, 0
  %v356 = vperm.slane %v353, 1
  %v357 = vperm.slane %v353, 2
  %361 = vmatpush.msra.mxu0 %v302
  %362 = vmatpush.msra.mxu0 %v299
  %363 = vmatpush.msra.mxu0 %v296
  %364 = vmatpush.msra.mxu0 %v293
  %365 = vmatpush.msra.mxu0 %v290
  %366 = vmatpush.msra.mxu0 %v287
  %367 = vmatpush.msra.mxu0 %v284
  %368 = vmatpush.msra.mxu0 %v281
  %369 = vmatpush.msra.mxu0 %v278
  %370 = vmatpush.msra.mxu0 %v275
  %371 = vmatpush.msra.mxu0 %v272
  %372 = vmatpush.msra.mxu0 %v269
  %373 = vmatpush.msra.mxu0 %v266
  %374 = vmatpush.msra.mxu0 %v263
  %375 = vmatpush.msra.mxu0 %v260
  %376 = vmatpush.msra.mxu0 %v257
  %377 = vmatmul.f32.gmra.mxu0 %v255
  %v378 = vpop.f32.mrf.mxu0
  %v379 = vadd.f32 %v355, %v378
  %380 = vdwg.mxu0
  %381 = vmatpush.msra.mxu0 %v350
  %382 = vmatpush.msra.mxu0 %v347
  %383 = vmatpush.msra.mxu0 %v344
  %384 = vmatpush.msra.mxu0 %v341
  %385 = vmatpush.msra.mxu0 %v338
  %386 = vmatpush.msra.mxu0 %v335
  %387 = vmatpush.msra.mxu0 %v332
  %388 = vmatpush.msra.mxu0 %v329
  %389 = vmatpush.msra.mxu0 %v326
  %390 = vmatpush.msra.mxu0 %v323
  %391 = vmatpush.msra.mxu0 %v320
  %392 = vmatpush.msra.mxu0 %v317
  %393 = vmatpush.msra.mxu0 %v314
  %394 = vmatpush.msra.mxu0 %v311
  %395 = vmatpush.msra.mxu0 %v308
  %396 = vmatpush.msra.mxu0 %v305
  %397 = vmatmul.f32.gmra.mxu0 %v256
  %v398 = vpop.f32.mrf.mxu0
  %v399 = vadd.f32 %v379, %v398
  %400 = vdwg.mxu0
  %401 = vmatpush.msra.mxu0 %v303
  %402 = vmatpush.msra.mxu0 %v300
  %403 = vmatpush.msra.mxu0 %v297
  %404 = vmatpush.msra.mxu0 %v294
  %405 = vmatpush.msra.mxu0 %v291
  %406 = vmatpush.msra.mxu0 %v288
  %407 = vmatpush.msra.mxu0 %v285
  %408 = vmatpush.msra.mxu0 %v282
  %409 = vmatpush.msra.mxu0 %v279
  %410 = vmatpush.msra.mxu0 %v276
  %411 = vmatpush.msra.mxu0 %v273
  %412 = vmatpush.msra.mxu0 %v270
  %413 = vmatpush.msra.mxu0 %v267
  %414 = vmatpush.msra.mxu0 %v264
  %415 = vmatpush.msra.mxu0 %v261
  %416 = vmatpush.msra.mxu0 %v258
  %417 = vmatmul.f32.gmra.mxu0 %v255
  %v418 = vpop.f32.mrf.mxu0
  %v419 = vadd.f32 %v356, %v418
  %420 = vdwg.mxu0
  %421 = vmatpush.msra.mxu0 %v351
  %422 = vmatpush.msra.mxu0 %v348
  %423 = vmatpush.msra.mxu0 %v345
  %424 = vmatpush.msra.mxu0 %v342
  %425 = vmatpush.msra.mxu0 %v339
  %426 = vmatpush.msra.mxu0 %v336
  %427 = vmatpush.msra.mxu0 %v333
  %428 = vmatpush.msra.mxu0 %v330
  %429 = vmatpush.msra.mxu0 %v327
  %430 = vmatpush.msra.mxu0 %v324
  %431 = vmatpush.msra.mxu0 %v321
  %432 = vmatpush.msra.mxu0 %v318
  %433 = vmatpush.msra.mxu0 %v315
  %434 = vmatpush.msra.mxu0 %v312
  %435 = vmatpush.msra.mxu0 %v309
  %436 = vmatpush.msra.mxu0 %v306
  %437 = vmatmul.f32.gmra.mxu0 %v256
  %v438 = vpop.f32.mrf.mxu0
  %v439 = vadd.f32 %v419, %v438
  %440 = vdwg.mxu0
  %441 = vmatpush.msra.mxu0 %v304
  %442 = vmatpush.msra.mxu0 %v301
  %443 = vmatpush.msra.mxu0 %v298
  %444 = vmatpush.msra.mxu0 %v295
  %445 = vmatpush.msra.mxu0 %v292
  %446 = vmatpush.msra.mxu0 %v289
  %447 = vmatpush.msra.mxu0 %v286
  %448 = vmatpush.msra.mxu0 %v283
  %449 = vmatpush.msra.mxu0 %v280
  %450 = vmatpush.msra.mxu0 %v277
  %451 = vmatpush.msra.mxu0 %v274
  %452 = vmatpush.msra.mxu0 %v271
  %453 = vmatpush.msra.mxu0 %v268
  %454 = vmatpush.msra.mxu0 %v265
  %455 = vmatpush.msra.mxu0 %v262
  %456 = vmatpush.msra.mxu0 %v259
  %457 = vmatmul.f32.gmra.mxu0 %v255
  %v458 = vpop.f32.mrf.mxu0
  %v459 = vadd.f32 %v357, %v458
  %460 = vdwg.mxu0
  %461 = vmatpush.msra.mxu0 %v352
  %462 = vmatpush.msra.mxu0 %v349
  %463 = vmatpush.msra.mxu0 %v346
  %464 = vmatpush.msra.mxu0 %v343
  %465 = vmatpush.msra.mxu0 %v340
  %466 = vmatpush.msra.mxu0 %v337
  %467 = vmatpush.msra.mxu0 %v334
  %468 = vmatpush.msra.mxu0 %v331
  %469 = vmatpush.msra.mxu0 %v328
  %470 = vmatpush.msra.mxu0 %v325
  %471 = vmatpush.msra.mxu0 %v322
  %472 = vmatpush.msra.mxu0 %v319
  %473 = vmatpush.msra.mxu0 %v316
  %474 = vmatpush.msra.mxu0 %v313
  %475 = vmatpush.msra.mxu0 %v310
  %476 = vmatpush.msra.mxu0 %v307
  %477 = vmatmul.f32.gmra.mxu0 %v256
  %v478 = vpop.f32.mrf.mxu0
  %v479 = vadd.f32 %v459, %v478
  %480 = vdwg.mxu0
  %v481 = vmax.f32 %v173, 0.0
  %v482 = vmax.f32 %v399, 0.0
  %v483 = vadd.f32 %v213, %v439
  %v484 = vadd.f32 %v253, %v479
  %v485 = vmax.f32 %v483, 0.0
  %v486 = vmax.f32 %v484, 0.0
  %v487 = vld [vmem:[%s6] sm:$0xff]
  %v488 = vld [vmem:[%s6 + $0x8] sm:$0xff]
  %v489 = vld [vmem:[%s6 + $0x10] sm:$0xff]
  %v490 = vld [vmem:[%s6 + $0x18] sm:$0xff]
  %v491 = vld [vmem:[%s6 + $0x20] sm:$0xff]
  %v492 = vld [vmem:[%s6 + $0x28] sm:$0xff]
  %v493 = vld [vmem:[%s6 + $0x30] sm:$0xff]
  %v494 = vld [vmem:[%s6 + $0x38] sm:$0xff]
  %v495 = vld [vmem:[%s6 + $0x40] sm:$0xff]
  %v496 = vld [vmem:[%s6 + $0x48] sm:$0xff]
  %v497 = vld [vmem:[%s6 + $0x50] sm:$0xff]
  %v498 = vld [vmem:[%s6 + $0x58] sm:$0xff]
  %v499 = vld [vmem:[%s6 + $0x60] sm:$0xff]
  %v500 = vld [vmem:[%s6 + $0x68] sm:$0xff]
  %v501 = vld [vmem:[%s6 + $0x70] sm:$0xff]
  %v502 = vld [vmem:[%s6 + $0x78] sm:$0xff]
  %v503 = vld [vmem:[%s6 + $0x80] sm:$0xff]
  %v504 = vld [vmem:[%s6 + $0x88] sm:$0xff]
  %v505 = vld [vmem:[%s6 + $0x90] sm:$0xff]
  %v506 = vld [vmem:[%s6 + $0x98] sm:$0xff]
  %v507 = vld [vmem:[%s6 + $0xa0] sm:$0xff]
  %v508 = vld [vmem:[%s6 + $0xa8] sm:$0xff]
  %v509 = vld [vmem:[%s6 + $0xb0] sm:$0xff]
  %v510 = vld [vmem:[%s6 + $0xb8] sm:$0xff]
  %v511 = vld [vmem:[%s6 + $0xc0] sm:$0xff]
  %v512 = vld [vmem:[%s6 + $0xc8] sm:$0xff]
  %v513 = vld [vmem:[%s6 + $0xd0] sm:$0xff]
  %v514 = vld [vmem:[%s6 + $0xd8] sm:$0xff]
  %v515 = vld [vmem:[%s6 + $0xe0] sm:$0xff]
  %v516 = vld [vmem:[%s6 + $0xe8] sm:$0xff]
  %v517 = vld [vmem:[%s6 + $0xf0] sm:$0xff]
  %v518 = vld [vmem:[%s6 + $0xf8] sm:$0xff]
  %519 = vmatpush.msra.mxu0 %v518
  %520 = vmatpush.msra.mxu0 %v517
  %521 = vmatpush.msra.mxu0 %v516
  %522 = vmatpush.msra.mxu0 %v515
  %523 = vmatpush.msra.mxu0 %v514
  %524 = vmatpush.msra.mxu0 %v513
  %525 = vmatpush.msra.mxu0 %v512
  %526 = vmatpush.msra.mxu0 %v511
  %527 = vmatpush.msra.mxu0 %v510
  %528 = vmatpush.msra.mxu0 %v509
  %529 = vmatpush.msra.mxu0 %v508
  %530 = vmatpush.msra.mxu0 %v507
  %531 = vmatpush.msra.mxu0 %v506
  %532 = vmatpush.msra.mxu0 %v505
  %533 = vmatpush.msra.mxu0 %v504
  %534 = vmatpush.msra.mxu0 %v503
  %535 = vmatmul.f32.gmra.mxu0 %v482
  %v536 = vpop.f32.mrf.mxu0
  %v537 = vadd.f32 0.0, %v536
  %538 = vdwg.mxu0
  %539 = vmatpush.msra.mxu0 %v502
  %540 = vmatpush.msra.mxu0 %v501
  %541 = vmatpush.msra.mxu0 %v500
  %542 = vmatpush.msra.mxu0 %v499
  %543 = vmatpush.msra.mxu0 %v498
  %544 = vmatpush.msra.mxu0 %v497
  %545 = vmatpush.msra.mxu0 %v496
  %546 = vmatpush.msra.mxu0 %v495
  %547 = vmatpush.msra.mxu0 %v494
  %548 = vmatpush.msra.mxu0 %v493
  %549 = vmatpush.msra.mxu0 %v492
  %550 = vmatpush.msra.mxu0 %v491
  %551 = vmatpush.msra.mxu0 %v490
  %552 = vmatpush.msra.mxu0 %v489
  %553 = vmatpush.msra.mxu0 %v488
  %554 = vmatpush.msra.mxu0 %v487
  %555 = vmatmul.f32.gmra.mxu0 %v481
  %v556 = vpop.f32.mrf.mxu0
  %v557 = vadd.f32 %v537, %v556
  %558 = vdwg.mxu0
  %v559 = vld [vmem:[%s6 + $0x100] sm:$0xff]
  %v560 = vld [vmem:[%s6 + $0x108] sm:$0xff]
  %v561 = vld [vmem:[%s6 + $0x110] sm:$0xff]
  %v562 = vld [vmem:[%s6 + $0x118] sm:$0xff]
  %v563 = vld [vmem:[%s6 + $0x120] sm:$0xff]
  %v564 = vld [vmem:[%s6 + $0x128] sm:$0xff]
  %v565 = vld [vmem:[%s6 + $0x130] sm:$0xff]
  %v566 = vld [vmem:[%s6 + $0x138] sm:$0xff]
  %v567 = vld [vmem:[%s6 + $0x140] sm:$0xff]
  %v568 = vld [vmem:[%s6 + $0x148] sm:$0xff]
  %v569 = vld [vmem:[%s6 + $0x150] sm:$0xff]
  %v570 = vld [vmem:[%s6 + $0x158] sm:$0xff]
  %v571 = vld [vmem:[%s6 + $0x160] sm:$0xff]
  %v572 = vld [vmem:[%s6 + $0x168] sm:$0xff]
  %v573 = vld [vmem:[%s6 + $0x170] sm:$0xff]
  %v574 = vld [vmem:[%s6 + $0x178] sm:$0xff]
  %v575 = vld [vmem:[%s6 + $0x180] sm:$0xff]
  %v576 = vld [vmem:[%s6 + $0x188] sm:$0xff]
  %v577 = vld [vmem:[%s6 + $0x190] sm:$0xff]
  %v578 = vld [vmem:[%s6 + $0x198] sm:$0xff]
  %v579 = vld [vmem:[%s6 + $0x1a0] sm:$0xff]
  %v580 = vld [vmem:[%s6 + $0x1a8] sm:$0xff]
  %v581 = vld [vmem:[%s6 + $0x1b0] sm:$0xff]
  %v582 = vld [vmem:[%s6 + $0x1b8] sm:$0xff]
  %v583 = vld [vmem:[%s6 + $0x1c0] sm:$0xff]
  %v584 = vld [vmem:[%s6 + $0x1c8] sm:$0xff]
  %v585 = vld [vmem:[%s6 + $0x1d0] sm:$0xff]
  %v586 = vld [vmem:[%s6 + $0x1d8] sm:$0xff]
  %v587 = vld [vmem:[%s6 + $0x1e0] sm:$0xff]
  %v588 = vld [vmem:[%s6 + $0x1e8] sm:$0xff]
  %v589 = vld [vmem:[%s6 + $0x1f0] sm:$0xff]
  %v590 = vld [vmem:[%s6 + $0x1f8] sm:$0xff]
  %591 = vmatpush.msra.mxu0 %v574
  %592 = vmatpush.msra.mxu0 %v573
  %593 = vmatpush.msra.mxu0 %v572
  %594 = vmatpush.msra.mxu0 %v571
  %595 = vmatpush.msra.mxu0 %v570
  %596 = vmatpush.msra.mxu0 %v569
  %597 = vmatpush.msra.mxu0 %v568
  %598 = vmatpush.msra.mxu0 %v567
  %599 = vmatpush.msra.mxu0 %v566
  %600 = vmatpush.msra.mxu0 %v565
  %601 = vmatpush.msra.mxu0 %v564
  %602 = vmatpush.msra.mxu0 %v563
  %603 = vmatpush.msra.mxu0 %v562
  %604 = vmatpush.msra.mxu0 %v561
  %605 = vmatpush.msra.mxu0 %v560
  %606 = vmatpush.msra.mxu0 %v559
  %607 = vmatmul.f32.gmra.mxu0 %v485
  %v608 = vpop.f32.mrf.mxu0
  %v609 = vadd.f32 0.0, %v608
  %610 = vdwg.mxu0
  %611 = vmatpush.msra.mxu0 %v590
  %612 = vmatpush.msra.mxu0 %v589
  %613 = vmatpush.msra.mxu0 %v588
  %614 = vmatpush.msra.mxu0 %v587
  %615 = vmatpush.msra.mxu0 %v586
  %616 = vmatpush.msra.mxu0 %v585
  %617 = vmatpush.msra.mxu0 %v584
  %618 = vmatpush.msra.mxu0 %v583
  %619 = vmatpush.msra.mxu0 %v582
  %620 = vmatpush.msra.mxu0 %v581
  %621 = vmatpush.msra.mxu0 %v580
  %622 = vmatpush.msra.mxu0 %v579
  %623 = vmatpush.msra.mxu0 %v578
  %624 = vmatpush.msra.mxu0 %v577
  %625 = vmatpush.msra.mxu0 %v576
  %626 = vmatpush.msra.mxu0 %v575
  %627 = vmatmul.f32.gmra.mxu0 %v486
  %v628 = vpop.f32.mrf.mxu0
  %v629 = vadd.f32 %v609, %v628
  %630 = vdwg.mxu0
  %v631 = vadd.f32 %v557, %v629
  %v632 = vld [vmem:[%s7] sm:$0x1]
  %v634 = vperm.slane %v632, 0
  %v636 = vadd.f32 %v631, %v634
  %637 = vst [vmem:[%s8] sm:$0xff] %v636
  // Predicated region
  $region34: #{headnet_dual_fused.1} parent=0 // pred_check
    _
  $region35: #{headnet_dual_fused.1} parent=0 // pred_check_branch
    %639 = sbr.rel (0) target = $region37
  $region36: #{headnet_dual_fused.1} parent=0 // pred_region
    _
  $region37: #{headnet_dual_fused.1} parent=0 // pred_fallthru
    _
  // Predicated region
  $region38: #{headnet_dual_fused.1} parent=0 // pred_check
    _
  $region39: #{headnet_dual_fused.1} parent=0 // pred_check_branch
    %641 = sbr.rel (0) target = $region41
  $region40: #{headnet_dual_fused.1} parent=0 // pred_region
    _
  $region41: #{headnet_dual_fused.1} parent=0 // pred_fallthru
    _

</llo_original>
